<compile_context>
chip_gen: v5e
topology: v5e:2x2
jax: 0.10.0
libtpu: 0.0.40
codegen_flags: <defaults>
</compile_context>

<pallas_src>
import functools

import jax
import jax.numpy as jnp
from jax.experimental import pallas as pl
from jax.experimental.pallas import tpu as pltpu

_LANE = 128
_SUBLANE = 8


def _round_up(n, m):
    return (n + m - 1) // m * m


def _mlp_kernel(x_ref, w1_ref, b1_ref, w2_ref, b2_ref, o_ref, *, num_classes):
    # In-kernel f32 -> bf16 cast of the activation tile (VPU work, hidden under
    # the MXU / DMA slots; avoids a separate XLA pass over x in HBM).
    xb = x_ref[...].astype(jnp.bfloat16)
    # Layer 1: (tm, IN) @ (IN, HP) on the MXU, accumulate in f32.
    h = jnp.dot(xb, w1_ref[...], preferred_element_type=jnp.float32)
    # Bias + ReLU in f32 on the VPU.
    h = jnp.maximum(h + b1_ref[...], 0.0)
    # Layer 2: (tm, HP) @ (HP, CP) on the MXU, accumulate in f32.
    out = jnp.dot(h.astype(jnp.bfloat16), w2_ref[...],
                  preferred_element_type=jnp.float32)
    # Store only the real classes: narrow but unpadded output (fewer HBM bytes).
    o_ref[...] = out[:, :num_classes] + b2_ref[...]


def prepare_params(w1, b1, w2, b2):
    """One-time weight prep (hoisted out of the per-forward path)."""
    IN, H = w1.shape
    assert w2.shape[0] == H
    C = w2.shape[1]
    HP = _round_up(H, _LANE)   # hidden padded to 128 lanes (zero cols are inert)
    CP = _round_up(C, _LANE)   # w2 N padded to 128 for the MXU; output stays (B, C)
    w1p = jnp.zeros((IN, HP), jnp.bfloat16).at[:, :H].set(w1.astype(jnp.bfloat16))
    b1p = jnp.zeros((1, HP), jnp.float32).at[:, :H].set(b1.astype(jnp.float32))
    w2p = jnp.zeros((HP, CP), jnp.bfloat16).at[:H, :C].set(w2.astype(jnp.bfloat16))
    b2p = b2.astype(jnp.float32).reshape(1, C)   # unpadded bias for the narrow store
    return w1p, b1p, w2p, b2p


def multi_class_classifier_forward(x, w1p, b1p, w2p, b2p, *, tm_max=2048):
    """x: (B, 16*num_FIRs*num_classes) f32; params from prepare_params().

    Returns (B, C) float32 == nn.Sequential(Linear, ReLU, Linear)(x) (bf16 MXU operands).
    """
    B, IN = x.shape
    assert w1p.shape[0] == IN
    HP = w1p.shape[1]
    CP = w2p.shape[1]
    C = b2p.shape[1]

    # Batch tile: multiple of 8 sublanes, large enough to amortize per-step
    # overhead. tm=2048, IN=512 -> ~8 MiB double-buffered x tiles: fits the
    # scoped VMEM limit on v5e/v6e/v7x with the limit below.
    tm = min(tm_max, _round_up(B, _SUBLANE))
    grid = (pl.cdiv(B, tm),)   # ragged last block handled by Pallas (no x padding/copy)

    flops = 2 * B * IN * HP + 2 * B * HP * CP
    bytes_accessed = (B * IN * 4            # x (f32, read once)
                      + IN * HP * 2 + HP * CP * 2   # bf16 weights
                      + (HP + C) * 4        # biases
                      + B * C * 4)          # output

    kernel = functools.partial(_mlp_kernel, num_classes=C)

    return pl.pallas_call(
        kernel,
        out_shape=jax.ShapeDtypeStruct((B, C), jnp.float32),
        grid=grid,
        in_specs=[
            pl.BlockSpec((tm, IN), lambda i: (i, 0)),   # x: row-tiled, pipelined
            pl.BlockSpec((IN, HP), lambda i: (0, 0)),   # w1: resident in VMEM
            pl.BlockSpec((1, HP), lambda i: (0, 0)),    # b1: resident
            pl.BlockSpec((HP, CP), lambda i: (0, 0)),   # w2: resident
            pl.BlockSpec((1, C), lambda i: (0, 0)),     # b2: resident (unpadded)
        ],
        out_specs=pl.BlockSpec((tm, C), lambda i: (i, 0)),  # unpadded (B, C) output
        compiler_params=pltpu.CompilerParams(
            dimension_semantics=("parallel",),   # megacore split on v7x
            vmem_limit_bytes=48 << 20,
        ),
        cost_estimate=pl.CostEstimate(
            flops=flops, transcendentals=0, bytes_accessed=bytes_accessed),
    )(x, w1p, b1p, w2p, b2p)


def _init_linear(key, fan_in, fan_out):
    # Deterministic init mimicking PyTorch nn.Linear default: U(+-1/sqrt(fan_in)).
    kw, kb = jax.random.split(key)
    bound = 1.0 / jnp.sqrt(jnp.float32(fan_in))
    w = jax.random.uniform(kw, (fan_in, fan_out), jnp.float32, -bound, bound)
    b = jax.random.uniform(kb, (fan_out,), jnp.float32, -bound, bound)
    return w, b


if __name__ == "__main__":
    # Small, module-consistent shapes
    num_FIRs = 4
    num_classes = 8
    batch = 2
    in_features = 16 * num_FIRs * num_classes  # 512
    hidden = 64

    key = jax.random.PRNGKey(0)
    kx, k1, k2 = jax.random.split(key, 3)

    x = jax.random.normal(kx, (batch, in_features), jnp.float32)
    w1, b1 = _init_linear(k1, in_features, hidden)
    w2, b2 = _init_linear(k2, hidden, num_classes)

    params = prepare_params(w1, b1, w2, b2)   # hoisted one-time weight prep
    out = multi_class_classifier_forward(x, *params)
    out = jax.block_until_ready(out)
    assert out.shape == (batch, num_classes)

    # Reference matching the kernel's precision (bf16 MXU operands, f32 accumulate).
    xb = x.astype(jnp.bfloat16).astype(jnp.float32)
    w1b = w1.astype(jnp.bfloat16).astype(jnp.float32)
    w2b = w2.astype(jnp.bfloat16).astype(jnp.float32)
    h_ref = jnp.maximum(xb @ w1b + b1, 0.0)
    ref_bf16 = h_ref.astype(jnp.bfloat16).astype(jnp.float32) @ w2b + b2
    assert jnp.allclose(out, ref_bf16, atol=2e-2, rtol=2e-2)

    # Sanity vs pure-f32 reference (loose tolerance due to bf16 MXU operands).
    ref_f32 = jnp.maximum(x @ w1 + b1, 0.0) @ w2 + b2
    assert jnp.allclose(out, ref_f32, atol=1e-1, rtol=1e-1)

    print("KERNEL_OK")
</pallas_src>

<mosaic_0001>
module attributes {stable_mosaic.version = 11 : i64} {
  func.func @_mlp_kernel(%arg0: i32, %arg1: memref<8x512xf32, #tpu.memory_space<vmem>>, %arg2: memref<512x128xbf16, #tpu.memory_space<vmem>>, %arg3: memref<1x128xf32, #tpu.memory_space<vmem>>, %arg4: memref<128x128xbf16, #tpu.memory_space<vmem>>, %arg5: memref<1x8xf32, #tpu.memory_space<vmem>>, %arg6: memref<8x8xf32, #tpu.memory_space<vmem>>) attributes {dimension_semantics = [#tpu.dimension_semantics<parallel>], iteration_bounds = array<i64: 1>, scalar_prefetch = 0 : i64, scratch_operands = 0 : i64, tpu.core_type = #tpu.core_type<tc>, window_params = [{transform_indices = @transform_0, window_bounds = array<i64: 8, 512>}, {pipeline_mode = #tpu.pipeline_mode<synchronous>, transform_indices = @transform_1, window_bounds = array<i64: 512, 128>}, {pipeline_mode = #tpu.pipeline_mode<synchronous>, transform_indices = @transform_2, window_bounds = array<i64: 1, 128>}, {pipeline_mode = #tpu.pipeline_mode<synchronous>, transform_indices = @transform_3, window_bounds = array<i64: 128, 128>}, {pipeline_mode = #tpu.pipeline_mode<synchronous>, transform_indices = @transform_4, window_bounds = array<i64: 1, 8>}, {transform_indices = @transform_5, window_bounds = array<i64: 8, 8>}]} {
    %c0 = arith.constant 0 : index
    %c0_0 = arith.constant 0 : index
    %0 = vector.load %arg1[%c0, %c0_0] : memref<8x512xf32, #tpu.memory_space<vmem>>, vector<8x512xf32>
    %1 = arith.truncf %0 : vector<8x512xf32> to vector<8x512xbf16>
    %c0_1 = arith.constant 0 : index
    %c0_2 = arith.constant 0 : index
    %2 = vector.load %arg2[%c0_1, %c0_2] : memref<512x128xbf16, #tpu.memory_space<vmem>>, vector<512x128xbf16>
    %cst = arith.constant dense<0.000000e+00> : vector<8x128xf32>
    %3 = tpu.matmul %1, %2, %cst {dimension_numbers = #tpu.dot_dimension_numbers<[1], [0], [0], [1], [0, 0, 1, 1], [], []>} : vector<8x512xbf16>, vector<512x128xbf16>, vector<8x128xf32> -> vector<8x128xf32>
    %c0_3 = arith.constant 0 : index
    %c0_4 = arith.constant 0 : index
    %4 = vector.load %arg3[%c0_3, %c0_4] : memref<1x128xf32, #tpu.memory_space<vmem>>, vector<1x128xf32>
    %5 = vector.broadcast %4 : vector<1x128xf32> to vector<8x128xf32>
    %6 = arith.addf %3, %5 : vector<8x128xf32>
    %cst_5 = arith.constant 0.000000e+00 : f32
    %7 = vector.broadcast %cst_5 : f32 to vector<8x128xf32>
    %8 = arith.maximumf %6, %7 : vector<8x128xf32>
    %9 = arith.truncf %8 : vector<8x128xf32> to vector<8x128xbf16>
    %c0_6 = arith.constant 0 : index
    %c0_7 = arith.constant 0 : index
    %10 = vector.load %arg4[%c0_6, %c0_7] : memref<128x128xbf16, #tpu.memory_space<vmem>>, vector<128x128xbf16>
    %cst_8 = arith.constant dense<0.000000e+00> : vector<8x128xf32>
    %11 = tpu.matmul %9, %10, %cst_8 {dimension_numbers = #tpu.dot_dimension_numbers<[1], [0], [0], [1], [0, 0, 1, 1], [], []>} : vector<8x128xbf16>, vector<128x128xbf16>, vector<8x128xf32> -> vector<8x128xf32>
    %12 = vector.extract_strided_slice %11 {offsets = [0, 0], sizes = [8, 8], strides = [1, 1]} : vector<8x128xf32> to vector<8x8xf32>
    %c0_9 = arith.constant 0 : index
    %c0_10 = arith.constant 0 : index
    %13 = vector.load %arg5[%c0_9, %c0_10] : memref<1x8xf32, #tpu.memory_space<vmem>>, vector<1x8xf32>
    %14 = vector.broadcast %13 : vector<1x8xf32> to vector<8x8xf32>
    %15 = arith.addf %12, %14 : vector<8x8xf32>
    %c0_11 = arith.constant 0 : index
    %c0_12 = arith.constant 0 : index
    %16 = vector.load %arg6[%c0_11, %c0_12] : memref<8x8xf32, #tpu.memory_space<vmem>>, vector<8x8xf32>
    tpu.vector_store %arg6[%c0_11, %c0_12], %15 {strides = array<i32>} : memref<8x8xf32, #tpu.memory_space<vmem>>, vector<8x8xf32>,
    return
  }
  func.func @transform_0(%arg0: i32) -> (i32, i32) {
    %c0_i32 = arith.constant 0 : i32
    %c0_i32_0 = arith.constant 0 : i32
    return %arg0, %c0_i32 : i32, i32
  }
  func.func @transform_1(%arg0: i32) -> (i32, i32) {
    %c0_i32 = arith.constant 0 : i32
    %c0_i32_0 = arith.constant 0 : i32
    %c0_i32_1 = arith.constant 0 : i32
    return %c0_i32, %c0_i32_0 : i32, i32
  }
  func.func @transform_2(%arg0: i32) -> (i32, i32) {
    %c0_i32 = arith.constant 0 : i32
    %c0_i32_0 = arith.constant 0 : i32
    %c0_i32_1 = arith.constant 0 : i32
    return %c0_i32, %c0_i32_0 : i32, i32
  }
  func.func @transform_3(%arg0: i32) -> (i32, i32) {
    %c0_i32 = arith.constant 0 : i32
    %c0_i32_0 = arith.constant 0 : i32
    %c0_i32_1 = arith.constant 0 : i32
    return %c0_i32, %c0_i32_0 : i32, i32
  }
  func.func @transform_4(%arg0: i32) -> (i32, i32) {
    %c0_i32 = arith.constant 0 : i32
    %c0_i32_0 = arith.constant 0 : i32
    %c0_i32_1 = arith.constant 0 : i32
    return %c0_i32, %c0_i32_0 : i32, i32
  }
  func.func @transform_5(%arg0: i32) -> (i32, i32) {
    %c0_i32 = arith.constant 0 : i32
    %c0_i32_0 = arith.constant 0 : i32
    return %arg0, %c0_i32 : i32, i32
  }
}

</mosaic_0001>

<llo_original>
// kernel: tpu_custom_call.1
$region0: #{tpu_custom_call.1}
  #allocation0 [shape = 'u32[]', space=smem, size = 0x4, offset = 0x4, fixed_abs, tag = 'smem constant byte address 0x4 - core index']
  #allocation1 [shape = 'u32[72,128]{1,0:T(1,128)}', space=vmem, size = 0x9000, scoped, tag = 'internal scratch']
  %s0 = inlined_call_operand.hbm [shape: f32[2,512], index: 0, kind: input, shape index: {}]
  %s1 = inlined_call_operand.hbm [shape: bf16[512,128], index: 1, kind: input, shape index: {}]
  %s2 = inlined_call_operand.vmem [shape: f32[1,128], index: 2, kind: input, shape index: {}]
  %s3 = inlined_call_operand.hbm [shape: bf16[128,128], index: 3, kind: input, shape index: {}]
  %s4 = inlined_call_operand.vmem [shape: f32[1,8], index: 4, kind: input, shape index: {}]
  %s5 = inlined_call_operand.hbm [shape: f32[2,8], index: 5, kind: output, shape index: {}]
  %s6 = sld [smem:[#allocation0]]
  $region42: #{tpu_custom_call.1} parent=0
    _
  %s8 = ssub.s32 1, %s6
  %s9 = scalar_select 0, %s8, %s6
  $region1: #{tpu_custom_call.1} parent=0
    #allocation2 [shape = 'u8[16384]{0}', space=vmem, size = 0x4000, scoped, tag = 'input window, operand 0, single buffered']
    #allocation3 [shape = 's32[1]{0}', space=sflag, size = 0x4, scoped, tag = 'scoped memory for tpu_custom_call.1']
    #allocation4 [shape = 's32[1]{0}', space=sflag, size = 0x4, scoped, tag = 'scoped memory for tpu_custom_call.1']
    #allocation5 [shape = 'u8[131072]{0}', space=vmem, size = 0x20000, scoped, tag = 'input window, operand 1, single buffered']
    #allocation6 [shape = 's32[1]{0}', space=sflag, size = 0x4, scoped, tag = 'scoped memory for tpu_custom_call.1']
    #allocation7 [shape = 'u8[32768]{0}', space=vmem, size = 0x8000, scoped, tag = 'input window, operand 3, single buffered']
    #allocation8 [shape = 'u8[4096]{0}', space=vmem, size = 0x1000, scoped, tag = 'output window, operand 0, single buffered']
    %10 = vsyncpa [#allocation3], 0
    %11 = vsyncpa [#allocation6], 0
    %12 = vsyncpa [#allocation4], 0
    // Predicated region
    $region2: #{tpu_custom_call.1} parent=1 // pred_check
      _
    $region3: #{tpu_custom_call.1} parent=1 // pred_check_branch
      %14 = sbr.rel (0) target = $region5
    $region4: #{tpu_custom_call.1} parent=1 // pred_region
      %16 = vsyncadd [#allocation3], 384
      %s17 = sshll.u32 %s0, 4
      %s18 = int_to_ptr.hbm [resolvable:$true] %s17
      %s19 = sshll.u32 [#allocation2], 4
      %s20 = int_to_ptr.vmem [resolvable:$true] %s19
      %25 = dma.hbm_to_vmem [thread:$0]  %s18, 128, %s20, [#allocation3], 128, 128, 8
    $region5: #{tpu_custom_call.1} parent=1 // pred_fallthru
      _
    // Predicated region
    $region6: #{tpu_custom_call.1} parent=1 // pred_check
      _
    $region7: #{tpu_custom_call.1} parent=1 // pred_check_branch
      %27 = sbr.rel (0) target = $region9
    $region8: #{tpu_custom_call.1} parent=1 // pred_region
      %29 = vsyncadd [#allocation6], 0
      %s30 = sshll.u32 %s1, 4
      %s31 = int_to_ptr.hbm [resolvable:$true] %s30
      %s32 = sshll.u32 [#allocation5], 4
      %s33 = int_to_ptr.vmem [resolvable:$true] %s32
      %38 = dma.hbm_to_vmem [thread:$0]  %s31, 4096, %s33, [#allocation6], 64, 64, 4
    $region9: #{tpu_custom_call.1} parent=1 // pred_fallthru
      _
    // Predicated region
    $region10: #{tpu_custom_call.1} parent=1 // pred_check
      _
    $region11: #{tpu_custom_call.1} parent=1 // pred_check_branch
      %40 = sbr.rel (0) target = $region13
    $region12: #{tpu_custom_call.1} parent=1 // pred_region
      _
    $region13: #{tpu_custom_call.1} parent=1 // pred_fallthru
      _
    // Predicated region
    $region14: #{tpu_custom_call.1} parent=1 // pred_check
      _
    $region15: #{tpu_custom_call.1} parent=1 // pred_check_branch
      %42 = sbr.rel (0) target = $region17
    $region16: #{tpu_custom_call.1} parent=1 // pred_region
      %44 = vsyncadd [#allocation6], 0
      %s45 = sshll.u32 %s3, 4
      %s46 = int_to_ptr.hbm [resolvable:$true] %s45
      %s47 = sshll.u32 [#allocation7], 4
      %s48 = int_to_ptr.vmem [resolvable:$true] %s47
      %53 = dma.hbm_to_vmem [thread:$0]  %s46, 1024, %s48, [#allocation6], 64, 64, 4
    $region17: #{tpu_custom_call.1} parent=1 // pred_fallthru
      _
    // Predicated region
    $region18: #{tpu_custom_call.1} parent=1 // pred_check
      _
    $region19: #{tpu_custom_call.1} parent=1 // pred_check_branch
      %55 = sbr.rel (0) target = $region21
    $region20: #{tpu_custom_call.1} parent=1 // pred_region
      _
    $region21: #{tpu_custom_call.1} parent=1 // pred_fallthru
      _
    // Predicated region
    $region22: #{tpu_custom_call.1} parent=1 // pred_check
      _
    $region23: #{tpu_custom_call.1} parent=1 // pred_check_branch
      %57 = sbr.rel (0) target = $region25
    $region24: #{tpu_custom_call.1} parent=1 // pred_region
      %59 = dma.done [#allocation3], 512
    $region25: #{tpu_custom_call.1} parent=1 // pred_fallthru
      _
    // Predicated region
    $region26: #{tpu_custom_call.1} parent=1 // pred_check
      _
    $region27: #{tpu_custom_call.1} parent=1 // pred_check_branch
      %61 = sbr.rel (0) target = $region29
    $region28: #{tpu_custom_call.1} parent=1 // pred_region
      %63 = dma.done [#allocation6], 4096
    $region29: #{tpu_custom_call.1} parent=1 // pred_fallthru
      _
    // Predicated region
    $region30: #{tpu_custom_call.1} parent=1 // pred_check
      _
    $region31: #{tpu_custom_call.1} parent=1 // pred_check_branch
      %65 = sbr.rel (0) target = $region33
    $region32: #{tpu_custom_call.1} parent=1 // pred_region
      %67 = dma.done [#allocation6], 1024
    $region33: #{tpu_custom_call.1} parent=1 // pred_fallthru
      _
    %v68 = vld [vmem:[#allocation2] sm:$0xff]
    %v69 = vld [vmem:[#allocation2 + $0x8] sm:$0xff]
    %v70 = vld [vmem:[#allocation2 + $0x10] sm:$0xff]
    %v71 = vld [vmem:[#allocation2 + $0x18] sm:$0xff]
    %76 = vst [vmem:[#allocation1] ss:$4 sm:$0xff] %v68
    %s77 = scalar_lea.vmem [#allocation1], 1
    %78 = vst [vmem:[%s77] ss:$4 sm:$0xff] %v69
    %s79 = scalar_lea.vmem [#allocation1], 2
    %80 = vst [vmem:[%s79] ss:$4 sm:$0xff] %v70
    %s81 = scalar_lea.vmem [#allocation1], 3
    %82 = vst [vmem:[%s81] ss:$4 sm:$0xff] %v71
    %v83 = vld.sshfl [vmem:[#allocation1] sm:$0xff pattern:$0x73625140]
    %v84 = vld.sshfl [vmem:[#allocation1 + $0x8] sm:$0xff pattern:$0x73625140]
    %v85 = vld.sshfl [vmem:[#allocation1 + $0x10] sm:$0xff pattern:$0x73625140]
    %v86 = vld.sshfl [vmem:[#allocation1 + $0x18] sm:$0xff pattern:$0x73625140]
    %v91 = vpack.c.bf16 %v83, %v83
    %v92 = vpack.c.bf16 %v84, %v84
    %v93 = vpack.c.bf16 %v85, %v85
    %v94 = vpack.c.bf16 %v86, %v86
    %v95 = vld [vmem:[#allocation5] sm:$0xf]
    %v96 = vld [vmem:[#allocation5 + $0x4] sm:$0xf]
    %v97 = vld [vmem:[#allocation5 + $0x8] sm:$0xf]
    %v98 = vld [vmem:[#allocation5 + $0xc] sm:$0xf]
    %v99 = vld [vmem:[#allocation5 + $0x10] sm:$0xf]
    %v100 = vld [vmem:[#allocation5 + $0x14] sm:$0xf]
    %v101 = vld [vmem:[#allocation5 + $0x18] sm:$0xf]
    %v102 = vld [vmem:[#allocation5 + $0x1c] sm:$0xf]
    %v103 = vld [vmem:[#allocation5 + $0x20] sm:$0xf]
    %v104 = vld [vmem:[#allocation5 + $0x24] sm:$0xf]
    %v105 = vld [vmem:[#allocation5 + $0x28] sm:$0xf]
    %v106 = vld [vmem:[#allocation5 + $0x2c] sm:$0xf]
    %v107 = vld [vmem:[#allocation5 + $0x30] sm:$0xf]
    %v108 = vld [vmem:[#allocation5 + $0x34] sm:$0xf]
    %v109 = vld [vmem:[#allocation5 + $0x38] sm:$0xf]
    %v110 = vld [vmem:[#allocation5 + $0x3c] sm:$0xf]
    %v111 = vld [vmem:[#allocation5 + $0x40] sm:$0xf]
    %v112 = vld [vmem:[#allocation5 + $0x44] sm:$0xf]
    %v113 = vld [vmem:[#allocation5 + $0x48] sm:$0xf]
    %v114 = vld [vmem:[#allocation5 + $0x4c] sm:$0xf]
    %v115 = vld [vmem:[#allocation5 + $0x50] sm:$0xf]
    %v116 = vld [vmem:[#allocation5 + $0x54] sm:$0xf]
    %v117 = vld [vmem:[#allocation5 + $0x58] sm:$0xf]
    %v118 = vld [vmem:[#allocation5 + $0x5c] sm:$0xf]
    %v119 = vld [vmem:[#allocation5 + $0x60] sm:$0xf]
    %v120 = vld [vmem:[#allocation5 + $0x64] sm:$0xf]
    %v121 = vld [vmem:[#allocation5 + $0x68] sm:$0xf]
    %v122 = vld [vmem:[#allocation5 + $0x6c] sm:$0xf]
    %v123 = vld [vmem:[#allocation5 + $0x70] sm:$0xf]
    %v124 = vld [vmem:[#allocation5 + $0x74] sm:$0xf]
    %v125 = vld [vmem:[#allocation5 + $0x78] sm:$0xf]
    %v126 = vld [vmem:[#allocation5 + $0x7c] sm:$0xf]
    %v127 = vld [vmem:[#allocation5 + $0x80] sm:$0xf]
    %v128 = vld [vmem:[#allocation5 + $0x84] sm:$0xf]
    %v129 = vld [vmem:[#allocation5 + $0x88] sm:$0xf]
    %v130 = vld [vmem:[#allocation5 + $0x8c] sm:$0xf]
    %v131 = vld [vmem:[#allocation5 + $0x90] sm:$0xf]
    %v132 = vld [vmem:[#allocation5 + $0x94] sm:$0xf]
    %v133 = vld [vmem:[#allocation5 + $0x98] sm:$0xf]
    %v134 = vld [vmem:[#allocation5 + $0x9c] sm:$0xf]
    %v135 = vld [vmem:[#allocation5 + $0xa0] sm:$0xf]
    %v136 = vld [vmem:[#allocation5 + $0xa4] sm:$0xf]
    %v137 = vld [vmem:[#allocation5 + $0xa8] sm:$0xf]
    %v138 = vld [vmem:[#allocation5 + $0xac] sm:$0xf]
    %v139 = vld [vmem:[#allocation5 + $0xb0] sm:$0xf]
    %v140 = vld [vmem:[#allocation5 + $0xb4] sm:$0xf]
    %v141 = vld [vmem:[#allocation5 + $0xb8] sm:$0xf]
    %v142 = vld [vmem:[#allocation5 + $0xbc] sm:$0xf]
    %v143 = vld [vmem:[#allocation5 + $0xc0] sm:$0xf]
    %v144 = vld [vmem:[#allocation5 + $0xc4] sm:$0xf]
    %v145 = vld [vmem:[#allocation5 + $0xc8] sm:$0xf]
    %v146 = vld [vmem:[#allocation5 + $0xcc] sm:$0xf]
    %v147 = vld [vmem:[#allocation5 + $0xd0] sm:$0xf]
    %v148 = vld [vmem:[#allocation5 + $0xd4] sm:$0xf]
    %v149 = vld [vmem:[#allocation5 + $0xd8] sm:$0xf]
    %v150 = vld [vmem:[#allocation5 + $0xdc] sm:$0xf]
    %v151 = vld [vmem:[#allocation5 + $0xe0] sm:$0xf]
    %v152 = vld [vmem:[#allocation5 + $0xe4] sm:$0xf]
    %v153 = vld [vmem:[#allocation5 + $0xe8] sm:$0xf]
    %v154 = vld [vmem:[#allocation5 + $0xec] sm:$0xf]
    %v155 = vld [vmem:[#allocation5 + $0xf0] sm:$0xf]
    %v156 = vld [vmem:[#allocation5 + $0xf4] sm:$0xf]
    %v157 = vld [vmem:[#allocation5 + $0xf8] sm:$0xf]
    %v158 = vld [vmem:[#allocation5 + $0xfc] sm:$0xf]
    %v159 = vld [vmem:[%s2] sm:$0x1]
    %v161 = vperm.slane %v159, 0
    %v227 = vunpack.c.l.b16 %v95
    %v228 = vunpack.c.l.b16 %v96
    %v229 = vunpack.c.l.b16 %v97
    %v230 = vunpack.c.l.b16 %v98
    %v231 = vunpack.c.l.b16 %v99
    %v232 = vunpack.c.l.b16 %v100
    %v233 = vunpack.c.l.b16 %v101
    %v234 = vunpack.c.l.b16 %v102
    %v235 = vunpack.c.l.b16 %v103
    %v236 = vunpack.c.l.b16 %v104
    %v237 = vunpack.c.l.b16 %v105
    %v238 = vunpack.c.l.b16 %v106
    %v239 = vunpack.c.l.b16 %v107
    %v240 = vunpack.c.l.b16 %v108
    %v241 = vunpack.c.l.b16 %v109
    %v242 = vunpack.c.l.b16 %v110
    %v243 = vunpack.c.l.b16 %v111
    %v244 = vunpack.c.l.b16 %v112
    %v245 = vunpack.c.l.b16 %v113
    %v246 = vunpack.c.l.b16 %v114
    %v247 = vunpack.c.l.b16 %v115
    %v248 = vunpack.c.l.b16 %v116
    %v249 = vunpack.c.l.b16 %v117
    %v250 = vunpack.c.l.b16 %v118
    %v251 = vunpack.c.l.b16 %v119
    %v252 = vunpack.c.l.b16 %v120
    %v253 = vunpack.c.l.b16 %v121
    %v254 = vunpack.c.l.b16 %v122
    %v255 = vunpack.c.l.b16 %v123
    %v256 = vunpack.c.l.b16 %v124
    %v257 = vunpack.c.l.b16 %v125
    %v258 = vunpack.c.l.b16 %v126
    %v259 = vunpack.c.l.b16 %v127
    %v260 = vunpack.c.l.b16 %v128
    %v261 = vunpack.c.l.b16 %v129
    %v262 = vunpack.c.l.b16 %v130
    %v263 = vunpack.c.l.b16 %v131
    %v264 = vunpack.c.l.b16 %v132
    %v265 = vunpack.c.l.b16 %v133
    %v266 = vunpack.c.l.b16 %v134
    %v267 = vunpack.c.l.b16 %v135
    %v268 = vunpack.c.l.b16 %v136
    %v269 = vunpack.c.l.b16 %v137
    %v270 = vunpack.c.l.b16 %v138
    %v271 = vunpack.c.l.b16 %v139
    %v272 = vunpack.c.l.b16 %v140
    %v273 = vunpack.c.l.b16 %v141
    %v274 = vunpack.c.l.b16 %v142
    %v275 = vunpack.c.l.b16 %v143
    %v276 = vunpack.c.l.b16 %v144
    %v277 = vunpack.c.l.b16 %v145
    %v278 = vunpack.c.l.b16 %v146
    %v279 = vunpack.c.l.b16 %v147
    %v280 = vunpack.c.l.b16 %v148
    %v281 = vunpack.c.l.b16 %v149
    %v282 = vunpack.c.l.b16 %v150
    %v283 = vunpack.c.l.b16 %v151
    %v284 = vunpack.c.l.b16 %v152
    %v285 = vunpack.c.l.b16 %v153
    %v286 = vunpack.c.l.b16 %v154
    %v287 = vunpack.c.l.b16 %v155
    %v288 = vunpack.c.l.b16 %v156
    %v289 = vunpack.c.l.b16 %v157
    %v290 = vunpack.c.l.b16 %v158
    %v291 = vpack.c.b16 %v228, %v227
    %v292 = vpack.c.b16 %v230, %v229
    %v293 = vpack.c.b16 %v232, %v231
    %v294 = vpack.c.b16 %v234, %v233
    %v295 = vpack.c.b16 %v236, %v235
    %v296 = vpack.c.b16 %v238, %v237
    %v297 = vpack.c.b16 %v240, %v239
    %v298 = vpack.c.b16 %v242, %v241
    %v299 = vpack.c.b16 %v244, %v243
    %v300 = vpack.c.b16 %v246, %v245
    %v301 = vpack.c.b16 %v248, %v247
    %v302 = vpack.c.b16 %v250, %v249
    %v303 = vpack.c.b16 %v252, %v251
    %v304 = vpack.c.b16 %v254, %v253
    %v305 = vpack.c.b16 %v256, %v255
    %v306 = vpack.c.b16 %v258, %v257
    %v307 = vpack.c.b16 %v260, %v259
    %v308 = vpack.c.b16 %v262, %v261
    %v309 = vpack.c.b16 %v264, %v263
    %v310 = vpack.c.b16 %v266, %v265
    %v311 = vpack.c.b16 %v268, %v267
    %v312 = vpack.c.b16 %v270, %v269
    %v313 = vpack.c.b16 %v272, %v271
    %v314 = vpack.c.b16 %v274, %v273
    %v315 = vpack.c.b16 %v276, %v275
    %v316 = vpack.c.b16 %v278, %v277
    %v317 = vpack.c.b16 %v280, %v279
    %v318 = vpack.c.b16 %v282, %v281
    %v319 = vpack.c.b16 %v284, %v283
    %v320 = vpack.c.b16 %v286, %v285
    %v321 = vpack.c.b16 %v288, %v287
    %v322 = vpack.c.b16 %v290, %v289
    %355 = vmatpush.bf16.msra.mxu0 %v298
    %356 = vmatpush.bf16.msra.mxu0 %v297
    %357 = vmatpush.bf16.msra.mxu0 %v296
    %358 = vmatpush.bf16.msra.mxu0 %v295
    %359 = vmatpush.bf16.msra.mxu0 %v294
    %360 = vmatpush.bf16.msra.mxu0 %v293
    %361 = vmatpush.bf16.msra.mxu0 %v292
    %362 = vmatpush.bf16.msra.mxu0 %v291
    %363 = vmatmul.bf16.gmra.mxu0 %v91
    %v364 = vpop.f32.mrf.mxu0
    %v365 = vadd.f32 %v161, %v364
    %v366 = vpop.f32.mrf.mxu0
    %367 = vdwg.mxu0
    %368 = vmatpush.bf16.msra.mxu0 %v306
    %369 = vmatpush.bf16.msra.mxu0 %v305
    %370 = vmatpush.bf16.msra.mxu0 %v304
    %371 = vmatpush.bf16.msra.mxu0 %v303
    %372 = vmatpush.bf16.msra.mxu0 %v302
    %373 = vmatpush.bf16.msra.mxu0 %v301
    %374 = vmatpush.bf16.msra.mxu0 %v300
    %375 = vmatpush.bf16.msra.mxu0 %v299
    %376 = vmatmul.bf16.gmra.mxu0 %v92
    %v377 = vpop.f32.mrf.mxu0
    %v378 = vadd.f32 %v365, %v377
    %v379 = vpop.f32.mrf.mxu0
    %380 = vdwg.mxu0
    %381 = vmatpush.bf16.msra.mxu0 %v314
    %382 = vmatpush.bf16.msra.mxu0 %v313
    %383 = vmatpush.bf16.msra.mxu0 %v312
    %384 = vmatpush.bf16.msra.mxu0 %v311
    %385 = vmatpush.bf16.msra.mxu0 %v310
    %386 = vmatpush.bf16.msra.mxu0 %v309
    %387 = vmatpush.bf16.msra.mxu0 %v308
    %388 = vmatpush.bf16.msra.mxu0 %v307
    %389 = vmatmul.bf16.gmra.mxu0 %v93
    %v390 = vpop.f32.mrf.mxu0
    %v391 = vadd.f32 %v378, %v390
    %v392 = vpop.f32.mrf.mxu0
    %393 = vdwg.mxu0
    %394 = vmatpush.bf16.msra.mxu0 %v322
    %395 = vmatpush.bf16.msra.mxu0 %v321
    %396 = vmatpush.bf16.msra.mxu0 %v320
    %397 = vmatpush.bf16.msra.mxu0 %v319
    %398 = vmatpush.bf16.msra.mxu0 %v318
    %399 = vmatpush.bf16.msra.mxu0 %v317
    %400 = vmatpush.bf16.msra.mxu0 %v316
    %401 = vmatpush.bf16.msra.mxu0 %v315
    %402 = vmatmul.bf16.gmra.mxu0 %v94
    %v403 = vpop.f32.mrf.mxu0
    %v404 = vadd.f32 %v391, %v403
    %v405 = vpop.f32.mrf.mxu0
    %406 = vdwg.mxu0
    %v407 = vmax.f32 %v404, 0.0
    %v408 = vpack.c.bf16 %v407, %v407
    %v409 = vld [vmem:[#allocation7] sm:$0xf]
    %v410 = vld [vmem:[#allocation7 + $0x4] sm:$0xf]
    %v411 = vld [vmem:[#allocation7 + $0x8] sm:$0xf]
    %v412 = vld [vmem:[#allocation7 + $0xc] sm:$0xf]
    %v413 = vld [vmem:[#allocation7 + $0x10] sm:$0xf]
    %v414 = vld [vmem:[#allocation7 + $0x14] sm:$0xf]
    %v415 = vld [vmem:[#allocation7 + $0x18] sm:$0xf]
    %v416 = vld [vmem:[#allocation7 + $0x1c] sm:$0xf]
    %v417 = vld [vmem:[#allocation7 + $0x20] sm:$0xf]
    %v418 = vld [vmem:[#allocation7 + $0x24] sm:$0xf]
    %v419 = vld [vmem:[#allocation7 + $0x28] sm:$0xf]
    %v420 = vld [vmem:[#allocation7 + $0x2c] sm:$0xf]
    %v421 = vld [vmem:[#allocation7 + $0x30] sm:$0xf]
    %v422 = vld [vmem:[#allocation7 + $0x34] sm:$0xf]
    %v423 = vld [vmem:[#allocation7 + $0x38] sm:$0xf]
    %v424 = vld [vmem:[#allocation7 + $0x3c] sm:$0xf]
    %v441 = vunpack.c.l.b16 %v409
    %v442 = vunpack.c.l.b16 %v410
    %v443 = vunpack.c.l.b16 %v411
    %v444 = vunpack.c.l.b16 %v412
    %v445 = vunpack.c.l.b16 %v413
    %v446 = vunpack.c.l.b16 %v414
    %v447 = vunpack.c.l.b16 %v415
    %v448 = vunpack.c.l.b16 %v416
    %v449 = vunpack.c.l.b16 %v417
    %v450 = vunpack.c.l.b16 %v418
    %v451 = vunpack.c.l.b16 %v419
    %v452 = vunpack.c.l.b16 %v420
    %v453 = vunpack.c.l.b16 %v421
    %v454 = vunpack.c.l.b16 %v422
    %v455 = vunpack.c.l.b16 %v423
    %v456 = vunpack.c.l.b16 %v424
    %v457 = vpack.c.b16 %v442, %v441
    %v458 = vpack.c.b16 %v444, %v443
    %v459 = vpack.c.b16 %v446, %v445
    %v460 = vpack.c.b16 %v448, %v447
    %v461 = vpack.c.b16 %v450, %v449
    %v462 = vpack.c.b16 %v452, %v451
    %v463 = vpack.c.b16 %v454, %v453
    %v464 = vpack.c.b16 %v456, %v455
    %473 = vmatpush.bf16.msra.mxu0 %v464
    %474 = vmatpush.bf16.msra.mxu0 %v463
    %475 = vmatpush.bf16.msra.mxu0 %v462
    %476 = vmatpush.bf16.msra.mxu0 %v461
    %477 = vmatpush.bf16.msra.mxu0 %v460
    %478 = vmatpush.bf16.msra.mxu0 %v459
    %479 = vmatpush.bf16.msra.mxu0 %v458
    %480 = vmatpush.bf16.msra.mxu0 %v457
    %481 = vmatmul.bf16.gmra.mxu0 %v408
    %v482 = vpop.f32.mrf.mxu0
    %v483 = vadd.f32 0.0, %v482
    %v484 = vpop.f32.mrf.mxu0
    %485 = vdwg.mxu0
    %v486 = vld [vmem:[%s4] sm:$0x1]
    %v488 = vperm.slane %v486, 0
    %v490 = vadd.f32 %v483, %v488
    %vm491 = vcmask 64512
    %492 = vst.msk [vmem:[#allocation8] sm:$0xff] %vm491, %v490
    // Predicated region
    $region34: #{tpu_custom_call.1} parent=1 // pred_check
      _
    $region35: #{tpu_custom_call.1} parent=1 // pred_check_branch
      %494 = sbr.rel (0) target = $region37
    $region36: #{tpu_custom_call.1} parent=1 // pred_region
      %496 = vsyncadd [#allocation4], 96
      %s497 = sshll.u32 [#allocation8], 4
      %s498 = int_to_ptr.vmem [resolvable:$true] %s497
      %s499 = sshll.u32 %s5, 4
      %s500 = int_to_ptr.hbm [resolvable:$true] %s499
      %505 = dma.vmem_to_hbm [thread:$0]  %s498, 32, %s500, [#allocation4], 32, 32, 2
    $region37: #{tpu_custom_call.1} parent=1 // pred_fallthru
      _
    // Predicated region
    $region38: #{tpu_custom_call.1} parent=1 // pred_check
      _
    $region39: #{tpu_custom_call.1} parent=1 // pred_check_branch
      %507 = sbr.rel (0) target = $region41
    $region40: #{tpu_custom_call.1} parent=1 // pred_region
      %509 = dma.done [#allocation4], 128
    $region41: #{tpu_custom_call.1} parent=1 // pred_fallthru
      _
    %510 = vsyncpa [#allocation3], 1
    %511 = vsyncpa [#allocation6], 1
    %512 = vsyncpa [#allocation4], 1

</llo_original>
